<compile_context>
chip_gen: v5e
topology: v5e:2x2
jax: 0.10.0
libtpu: 0.0.40
codegen_flags: <defaults>
</compile_context>

<pallas_src>
import jax
import jax.numpy as jnp
from jax.experimental import pallas as pl
from jax.experimental.pallas import tpu as pltpu


_MAX_INFLIGHT_COPIES = 8   # bound on outstanding row DMAs per grid step


def _gather_rows_kernel(ids_ref, table_ref, out_ref, row_buf, copy_sem):
    """Gather embedding-table rows named by the token ids of this tile.

    ids_ref:   SMEM  [T_pad]      int32  (scalar-prefetched token ids)
    table_ref: HBM   [V, D]       f32    (memory_space=pl.ANY, never tiled)
    out_ref:   VMEM  [tile_t, D]  f32    (pipelined output block)
    row_buf:   VMEM  [tile_t, D]  f32    (scratch the row DMAs land in)
    copy_sem:  scalar DMA semaphore shared by all row copies of this step
    """
    tile_t = out_ref.shape[0]
    base = pl.program_id(0) * tile_t
    lookahead = min(_MAX_INFLIGHT_COPIES, tile_t)

    def start_row(t):
        row = ids_ref[base + t]
        pltpu.make_async_copy(
            table_ref.at[pl.ds(row, 1), :],
            row_buf.at[pl.ds(t, 1), :],
            copy_sem,
        ).start()

    def wait_row(t):
        # Only the transfer shape matters for wait(); src index is a dummy.
        pltpu.make_async_copy(
            table_ref.at[pl.ds(0, 1), :],
            row_buf.at[pl.ds(t, 1), :],
            copy_sem,
        ).wait()

    # Prime the in-flight window.
    @pl.loop(0, lookahead)
    def _(t):
        start_row(t)

    # Retire copies in order, keeping up to `lookahead` outstanding.
    @pl.loop(0, tile_t)
    def _(t):
        wait_row(t)

        @pl.when(t + lookahead < tile_t)
        def _():
            start_row(t + lookahead)

    out_ref[...] = row_buf[...]


def embedding_lookup(sentence, table, *, tile_t=64):
    """sentence: [B, S] int ids; table: [V, D] float32 -> [B, S, D] float32."""
    b, s = sentence.shape
    v, d = table.shape
    t = b * s
    t_pad = tile_t * pl.cdiv(t, tile_t)

    ids = sentence.reshape(t).astype(jnp.int32)
    # Clamp so a stray out-of-range id cannot become an out-of-bounds DMA.
    # (PyTorch's Embedding would raise; here it maps to a valid row instead.)
    ids = jnp.clip(ids, 0, v - 1)
    # Pad to the tile multiple instead of asserting; pad ids gather row 0
    # (the zeroed padding row) and are sliced off below.
    ids = jnp.pad(ids, (0, t_pad - t))

    out = pl.pallas_call(
        _gather_rows_kernel,
        out_shape=jax.ShapeDtypeStruct((t_pad, d), table.dtype),
        grid_spec=pltpu.PrefetchScalarGridSpec(
            num_scalar_prefetch=1,                        # ids -> SMEM
            grid=(t_pad // tile_t,),
            in_specs=[pl.BlockSpec(memory_space=pl.ANY)],  # table stays in HBM
            out_specs=pl.BlockSpec((tile_t, d), lambda i, ids: (i, 0)),
            scratch_shapes=[
                pltpu.VMEM((tile_t, d), table.dtype),
                pltpu.SemaphoreType.DMA(()),
            ],
        ),
        compiler_params=pltpu.CompilerParams(
            dimension_semantics=("parallel",)),
        cost_estimate=pl.CostEstimate(
            flops=0,
            transcendentals=0,
            bytes_accessed=2 * t_pad * d * 4 + t_pad * 4),
    )(ids, table)
    return out[:t].reshape(b, s, d)


class SeqModelPallas:
    """JAX/Pallas port of SeqModel."""

    def __init__(self, word_vocab_size, word_embedding_dim, key):
        # torch.nn.Embedding default init: N(0, 1); padding_idx=0 row zeroed.
        w = jax.random.normal(
            key, (word_vocab_size, word_embedding_dim), dtype=jnp.float32)
        self.word_embeddings = w.at[0].set(0.0)

    def forward(self, sentence):
        # Reference forward() is a stub; we expose the embedding lookup,
        # which is the only compute defined by the module.
        return embedding_lookup(sentence, self.word_embeddings)


if __name__ == "__main__":
    key = jax.random.PRNGKey(0)
    k_emb, k_ids = jax.random.split(key)

    B, S = 2, 8            # batch, sequence length
    VOCAB, DIM = 64, 32    # para.word_vocab_size, para.word_embedding_dim

    model = SeqModelPallas(VOCAB, DIM, k_emb)

    sentence = jax.random.randint(k_ids, (B, S), 0, VOCAB, dtype=jnp.int32)
    sentence = sentence.at[:, -2:].set(0)   # exercise padding_idx=0 rows

    out = model.forward(sentence)
    out = jax.block_until_ready(out)

    # Correctness check vs. plain-JAX gather reference.
    ref = jnp.take(model.word_embeddings, sentence, axis=0)
    assert out.shape == (B, S, DIM)
    assert out.dtype == jnp.float32
    assert jnp.allclose(out, ref, atol=1e-6)
    # padding rows must be exactly zero
    assert jnp.all(out[:, -2:, :] == 0.0)

    print("KERNEL_OK")
</pallas_src>

<mosaic_0001>
module attributes {stable_mosaic.version = 11 : i64} {
  func.func @_gather_rows_kernel(%arg0: i32, %arg1: memref<64xi32, #tpu.memory_space<smem>>, %arg2: memref<64x32xf32, #tpu.memory_space<any>>, %arg3: memref<64x32xf32, #tpu.memory_space<vmem>>, %arg4: memref<64x32xf32, #tpu.memory_space<vmem>>, %arg5: memref<!tpu.dma_semaphore, #tpu.memory_space<semaphore_mem>>) attributes {dimension_semantics = [#tpu.dimension_semantics<parallel>], iteration_bounds = array<i64: 1>, scalar_prefetch = 1 : i64, scratch_operands = 2 : i64, tpu.core_type = #tpu.core_type<tc>, window_params = [{}, {transform_indices = @transform_1, window_bounds = array<i64: 64, 32>}]} {
    %c64_i32 = arith.constant 64 : i32
    %0 = arith.muli %arg0, %c64_i32 : i32
    %c0_i32 = arith.constant 0 : i32
    %c8_i32 = arith.constant 8 : i32
    %1 = arith.addi %c0_i32, %c8_i32 : i32
    %c1_i32 = arith.constant 1 : i32
    scf.for %arg6 = %c0_i32 to %1 step %c1_i32  : i32 {
      %c1_i32_8 = arith.constant 1 : i32
      %5 = arith.muli %arg6, %c1_i32_8 : i32
      %c0_i32_9 = arith.constant 0 : i32
      %6 = arith.addi %c0_i32_9, %5 : i32
      %7 = arith.addi %0, %6 : i32
      %8 = arith.index_cast %7 : i32 to index
      %9 = memref.load %arg1[%8] : memref<64xi32, #tpu.memory_space<smem>>
      %c0_i32_10 = arith.constant 0 : i32
      %10 = tpu.memref_slice %arg2[%9, %c0_i32_10] : memref<64x32xf32, #tpu.memory_space<any>> -> memref<1x32xf32, #tpu.memory_space<any>>
      %c0_i32_11 = arith.constant 0 : i32
      %11 = tpu.memref_slice %arg4[%6, %c0_i32_11] : memref<64x32xf32, #tpu.memory_space<vmem>> -> memref<1x32xf32, #tpu.memory_space<vmem>>
      tpu.enqueue_dma source(%10 : memref<1x32xf32, #tpu.memory_space<any>>) target(%11 : memref<1x32xf32, #tpu.memory_space<vmem>>) target_semaphore(%arg5 : memref<!tpu.dma_semaphore, #tpu.memory_space<semaphore_mem>>)
    }
    %c8_i32_0 = arith.constant 8 : i32
    %c0_i32_1 = arith.constant 0 : i32
    %c64_i32_2 = arith.constant 64 : i32
    %2 = arith.addi %c0_i32_1, %c64_i32_2 : i32
    %c1_i32_3 = arith.constant 1 : i32
    scf.for %arg6 = %c0_i32_1 to %2 step %c1_i32_3  : i32 {
      %c1_i32_8 = arith.constant 1 : i32
      %5 = arith.muli %arg6, %c1_i32_8 : i32
      %c0_i32_9 = arith.constant 0 : i32
      %6 = arith.addi %c0_i32_9, %5 : i32
      %c0_i32_10 = arith.constant 0 : i32
      %c0_i32_11 = arith.constant 0 : i32
      %7 = tpu.memref_slice %arg2[%c0_i32_10, %c0_i32_11] : memref<64x32xf32, #tpu.memory_space<any>> -> memref<1x32xf32, #tpu.memory_space<any>>
      %c0_i32_12 = arith.constant 0 : i32
      %8 = tpu.memref_slice %arg4[%6, %c0_i32_12] : memref<64x32xf32, #tpu.memory_space<vmem>> -> memref<1x32xf32, #tpu.memory_space<vmem>>
      tpu.wait_dma2 semaphore(%arg5 : memref<!tpu.dma_semaphore, #tpu.memory_space<semaphore_mem>>) src(%7 : memref<1x32xf32, #tpu.memory_space<any>>) dst(%8 : memref<1x32xf32, #tpu.memory_space<vmem>>)
      %c8_i32_13 = arith.constant 8 : i32
      %9 = arith.addi %6, %c8_i32_13 : i32
      %c64_i32_14 = arith.constant 64 : i32
      %10 = arith.cmpi slt, %9, %c64_i32_14 : i32
      %11 = arith.extui %10 : i1 to i32
      %c0_i32_15 = arith.constant 0 : i32
      %12 = arith.cmpi ne, %11, %c0_i32_15 : i32
      scf.if %12 {
        %c8_i32_16 = arith.constant 8 : i32
        %13 = arith.addi %6, %c8_i32_16 : i32
        %14 = arith.addi %0, %13 : i32
        %15 = arith.index_cast %14 : i32 to index
        %16 = memref.load %arg1[%15] : memref<64xi32, #tpu.memory_space<smem>>
        %c0_i32_17 = arith.constant 0 : i32
        %17 = tpu.memref_slice %arg2[%16, %c0_i32_17] : memref<64x32xf32, #tpu.memory_space<any>> -> memref<1x32xf32, #tpu.memory_space<any>>
        %c0_i32_18 = arith.constant 0 : i32
        %18 = tpu.memref_slice %arg4[%13, %c0_i32_18] : memref<64x32xf32, #tpu.memory_space<vmem>> -> memref<1x32xf32, #tpu.memory_space<vmem>>
        tpu.enqueue_dma source(%17 : memref<1x32xf32, #tpu.memory_space<any>>) target(%18 : memref<1x32xf32, #tpu.memory_space<vmem>>) target_semaphore(%arg5 : memref<!tpu.dma_semaphore, #tpu.memory_space<semaphore_mem>>)
      } else {
      }
    }
    %c64_i32_4 = arith.constant 64 : i32
    %c0 = arith.constant 0 : index
    %c0_5 = arith.constant 0 : index
    %3 = vector.load %arg4[%c0, %c0_5] : memref<64x32xf32, #tpu.memory_space<vmem>>, vector<64x32xf32>
    %c0_6 = arith.constant 0 : index
    %c0_7 = arith.constant 0 : index
    %4 = vector.load %arg3[%c0_6, %c0_7] : memref<64x32xf32, #tpu.memory_space<vmem>>, vector<64x32xf32>
    tpu.vector_store %arg3[%c0_6, %c0_7], %3 {strides = array<i32>} : memref<64x32xf32, #tpu.memory_space<vmem>>, vector<64x32xf32>,
    return
  }
  func.func @transform_1(%arg0: i32, %arg1: memref<64xi32, #tpu.memory_space<smem>>) -> (i32, i32) {
    %c0_i32 = arith.constant 0 : i32
    %c0_i32_0 = arith.constant 0 : i32
    return %arg0, %c0_i32 : i32, i32
  }
}

</mosaic_0001>

<llo_original>
// kernel: tpu_custom_call.1
$region0: #{tpu_custom_call.1}
  #allocation0 [shape = 'u32[]', space=smem, size = 0x4, offset = 0x4, fixed_abs, tag = 'smem constant byte address 0x4 - core index']
  #allocation1 [shape = 'u32[72,128]{1,0:T(1,128)}', space=vmem, size = 0x9000, scoped, tag = 'internal scratch']
  #allocation2 [shape = 'f32[64,32]{1,0:T(8,128)}', space=vmem, size = 0x8000, scoped, tag = 'scratch operand']
  #allocation3 [shape = 's32[1]{0}', space=sflag, size = 0x4, scoped, tag = 'scratch operand']
  #allocation4 [shape = 's32[1]{0}', space=sflag, size = 0x4, scoped, tag = 'scoped memory for tpu_custom_call.1']
  #allocation5 [shape = 'u8[512]{0}', space=smem, size = 0x200, scoped, tag = 'prefetched SMEM operand 0']
  #allocation6 [shape = 's32[]', space=sflag, size = 0x4, offset = 0, fixed_abs, tag = 'sflag constant byte address 0x0 - dummy sync flag']
  #allocation7 [shape = 's32[]', space=sflag, size = 0x4, offset = 0, fixed_abs, tag = 'sflag constant byte address 0x0 - dummy sync flag']
  %s0 = inlined_call_operand.vmem [shape: s32[64], index: 0, kind: input, shape index: {}]
  %s1 = inlined_call_operand.vmem [shape: f32[64,32], index: 1, kind: input, shape index: {}]
  %s2 = inlined_call_operand.vmem [shape: f32[64,32], index: 2, kind: output, shape index: {}]
  %s3 = sld [smem:[#allocation0]]
  $region88: #{tpu_custom_call.1} parent=0
    _
  %s5 = ssub.s32 1, %s3
  %s6 = scalar_select 0, %s5, %s3
  %s8 = sshll.u32 %s0, 4
  %s9 = int_to_ptr.vmem [resolvable:$true] %s8
  %11 = dma.vmem_to_smem %s9, 16, [#allocation5], [#allocation4]
  %13 = dma.done [#allocation4], 16
  %14 = sfence
  %s15 = smul.u32 0, 64
  loop: start=0, step=1, limit=8
  $region2: #{tpu_custom_call.1} parent=0 // loop_pre_header
    _
  $region3: #{tpu_custom_call.1} parent=0 // loop_header
    %s17 = sphi 0, %s21
    %p18 = scmp.ge.s32.totalorder %s17, 8
  $region4: #{tpu_custom_call.1} parent=0 // loop_header_branch
    %20 = sbr.rel (%p18) target = $region8
  $region5: #{tpu_custom_call.1} parent=0 // loop_body
    %s22 = sadd.s32 %s15, %s17
    %s23 = sld [smem:[#allocation5 + %s22]]
    %s24 = scalar_lea.vmem %s1, %s23
    %s25 = scalar_lea.vmem [#allocation2], %s17
    // Predicated region
    $region9: #{tpu_custom_call.1} parent=5 // pred_check
      _
    $region10: #{tpu_custom_call.1} parent=5 // pred_check_branch
      %27 = sbr.rel target = $region12
    $region11: #{tpu_custom_call.1} parent=5 // pred_region
      // Predicated region
      $region24: #{tpu_custom_call.1} parent=11 // pred_check
        _
      $region25: #{tpu_custom_call.1} parent=11 // pred_check_branch
        %43 = sbr.rel (0) target = $region27
      $region26: #{tpu_custom_call.1} parent=11 // pred_region
        %s45 = ssub.s32 2, 1
        loop: start=0, step=1, limit=1
        $region28: #{tpu_custom_call.1} parent=26 // loop_pre_header
          _
        $region29: #{tpu_custom_call.1} parent=26 // loop_header
          %s47 = sphi 0, %s51
          %p48 = scmp.ge.s32.totalorder %s47, 1
          %s52 = sphi %s24, %s24
          %s53 = sphi %s25, %s25
        $region30: #{tpu_custom_call.1} parent=26 // loop_header_branch
          %50 = sbr.rel (%p48) target = $region34
        $region31: #{tpu_custom_call.1} parent=26 // loop_body
          %v54 = vld [vmem:[%s52] sm:%s45]
          %55 = vst [vmem:[%s53] sm:%s45] %v54
        $region32: #{tpu_custom_call.1} parent=26 // loop_footer
          %s51 = sadd.s32 1, %s47
        $region33: #{tpu_custom_call.1} parent=26 // loop_footer_branch
          %46 = sbr.rel target = $region29
        $region34: #{tpu_custom_call.1} parent=26 // loop_exit
          _
      $region27: #{tpu_custom_call.1} parent=11 // pred_fallthru
        _
    $region12: #{tpu_custom_call.1} parent=5 // pred_fallthru
      _
    // Predicated region
    $region13: #{tpu_custom_call.1} parent=5 // pred_check
      _
    $region14: #{tpu_custom_call.1} parent=5 // pred_check_branch
      %29 = sbr.rel (0) target = $region16
    $region15: #{tpu_custom_call.1} parent=5 // pred_region
      %s31 = ssub.s32 2, 1
      loop: start=0, step=1, limit=1
      $region17: #{tpu_custom_call.1} parent=15 // loop_pre_header
        _
      $region18: #{tpu_custom_call.1} parent=15 // loop_header
        %s33 = sphi 0, %s37
        %p34 = scmp.ge.s32.totalorder %s33, 1
        %s38 = sphi %s24, %s24
        %s39 = sphi %s25, %s25
      $region19: #{tpu_custom_call.1} parent=15 // loop_header_branch
        %36 = sbr.rel (%p34) target = $region23
      $region20: #{tpu_custom_call.1} parent=15 // loop_body
        %v40 = vld [vmem:[%s38] sm:%s31]
        %41 = vst [vmem:[%s39] sm:%s31] %v40
      $region21: #{tpu_custom_call.1} parent=15 // loop_footer
        %s37 = sadd.s32 1, %s33
      $region22: #{tpu_custom_call.1} parent=15 // loop_footer_branch
        %32 = sbr.rel target = $region18
      $region23: #{tpu_custom_call.1} parent=15 // loop_exit
        _
    $region16: #{tpu_custom_call.1} parent=5 // pred_fallthru
      _
    // Predicated region
    $region35: #{tpu_custom_call.1} parent=5 // pred_check
      _
    $region36: #{tpu_custom_call.1} parent=5 // pred_check_branch
      %58 = sbr.rel (0) target = $region38
    $region37: #{tpu_custom_call.1} parent=5 // pred_region
      %59 = vsyncadd [#allocation3], 16
    $region38: #{tpu_custom_call.1} parent=5 // pred_fallthru
      _
  $region6: #{tpu_custom_call.1} parent=0 // loop_footer
    %s21 = sadd.s32 1, %s17
  $region7: #{tpu_custom_call.1} parent=0 // loop_footer_branch
    %16 = sbr.rel target = $region3
  $region8: #{tpu_custom_call.1} parent=0 // loop_exit
    _
  loop: start=0, step=1, limit=64
  $region39: #{tpu_custom_call.1} parent=0 // loop_pre_header
    _
  $region40: #{tpu_custom_call.1} parent=0 // loop_header
    %s61 = sphi 0, %s65
    %p62 = scmp.ge.s32.totalorder %s61, 64
  $region41: #{tpu_custom_call.1} parent=0 // loop_header_branch
    %64 = sbr.rel (%p62) target = $region45
  $region42: #{tpu_custom_call.1} parent=0 // loop_body
    %s66 = smul.u32 1, 1
    %s67 = sshll.u32 %s66, 4
    %68 = dma.done [#allocation3], %s67
    %s69 = sadd.s32 %s61, 8
    %p70 = scmp.lt.s32.totalorder %s69, 64
    // Predicated region
    $region46: #{tpu_custom_call.1} parent=42 // pred_check
      %p71 = pneg %p70
    $region47: #{tpu_custom_call.1} parent=42 // pred_check_branch
      %73 = sbr.rel (%p71) target = $region49
    $region48: #{tpu_custom_call.1} parent=42 // pred_region
      %s74 = sadd.s32 %s15, %s69
      %s75 = sld [smem:[#allocation5 + %s74]]
      %s76 = scalar_lea.vmem %s1, %s75
      %s77 = scalar_lea.vmem [#allocation2], %s69
      // Predicated region
      $region50: #{tpu_custom_call.1} parent=48 // pred_check
        _
      $region51: #{tpu_custom_call.1} parent=48 // pred_check_branch
        %79 = sbr.rel target = $region53
      $region52: #{tpu_custom_call.1} parent=48 // pred_region
        // Predicated region
        $region65: #{tpu_custom_call.1} parent=52 // pred_check
          _
        $region66: #{tpu_custom_call.1} parent=52 // pred_check_branch
          %95 = sbr.rel (0) target = $region68
        $region67: #{tpu_custom_call.1} parent=52 // pred_region
          %s97 = ssub.s32 2, 1
          loop: start=0, step=1, limit=1
          $region69: #{tpu_custom_call.1} parent=67 // loop_pre_header
            _
          $region70: #{tpu_custom_call.1} parent=67 // loop_header
            %s99 = sphi 0, %s103
            %p100 = scmp.ge.s32.totalorder %s99, 1
            %s104 = sphi %s76, %s76
            %s105 = sphi %s77, %s77
          $region71: #{tpu_custom_call.1} parent=67 // loop_header_branch
            %102 = sbr.rel (%p100) target = $region75
          $region72: #{tpu_custom_call.1} parent=67 // loop_body
            %v106 = vld [vmem:[%s104] sm:%s97]
            %107 = vst [vmem:[%s105] sm:%s97] %v106
          $region73: #{tpu_custom_call.1} parent=67 // loop_footer
            %s103 = sadd.s32 1, %s99
          $region74: #{tpu_custom_call.1} parent=67 // loop_footer_branch
            %98 = sbr.rel target = $region70
          $region75: #{tpu_custom_call.1} parent=67 // loop_exit
            _
        $region68: #{tpu_custom_call.1} parent=52 // pred_fallthru
          _
      $region53: #{tpu_custom_call.1} parent=48 // pred_fallthru
        _
      // Predicated region
      $region54: #{tpu_custom_call.1} parent=48 // pred_check
        _
      $region55: #{tpu_custom_call.1} parent=48 // pred_check_branch
        %81 = sbr.rel (0) target = $region57
      $region56: #{tpu_custom_call.1} parent=48 // pred_region
        %s83 = ssub.s32 2, 1
        loop: start=0, step=1, limit=1
        $region58: #{tpu_custom_call.1} parent=56 // loop_pre_header
          _
        $region59: #{tpu_custom_call.1} parent=56 // loop_header
          %s85 = sphi 0, %s89
          %p86 = scmp.ge.s32.totalorder %s85, 1
          %s90 = sphi %s76, %s76
          %s91 = sphi %s77, %s77
        $region60: #{tpu_custom_call.1} parent=56 // loop_header_branch
          %88 = sbr.rel (%p86) target = $region64
        $region61: #{tpu_custom_call.1} parent=56 // loop_body
          %v92 = vld [vmem:[%s90] sm:%s83]
          %93 = vst [vmem:[%s91] sm:%s83] %v92
        $region62: #{tpu_custom_call.1} parent=56 // loop_footer
          %s89 = sadd.s32 1, %s85
        $region63: #{tpu_custom_call.1} parent=56 // loop_footer_branch
          %84 = sbr.rel target = $region59
        $region64: #{tpu_custom_call.1} parent=56 // loop_exit
          _
      $region57: #{tpu_custom_call.1} parent=48 // pred_fallthru
        _
      // Predicated region
      $region76: #{tpu_custom_call.1} parent=48 // pred_check
        _
      $region77: #{tpu_custom_call.1} parent=48 // pred_check_branch
        %110 = sbr.rel (0) target = $region79
      $region78: #{tpu_custom_call.1} parent=48 // pred_region
        %111 = vsyncadd [#allocation3], 16
      $region79: #{tpu_custom_call.1} parent=48 // pred_fallthru
        _
    $region49: #{tpu_custom_call.1} parent=42 // pred_fallthru
      _
  $region43: #{tpu_custom_call.1} parent=0 // loop_footer
    %s65 = sadd.s32 1, %s61
  $region44: #{tpu_custom_call.1} parent=0 // loop_footer_branch
    %60 = sbr.rel target = $region40
  $region45: #{tpu_custom_call.1} parent=0 // loop_exit
    _
  %v112 = vld [vmem:[#allocation2] sm:$0xff]
  %v113 = vld [vmem:[#allocation2 + $0x8] sm:$0xff]
  %v114 = vld [vmem:[#allocation2 + $0x10] sm:$0xff]
  %v115 = vld [vmem:[#allocation2 + $0x18] sm:$0xff]
  %v116 = vld [vmem:[#allocation2 + $0x20] sm:$0xff]
  %v117 = vld [vmem:[#allocation2 + $0x28] sm:$0xff]
  %v118 = vld [vmem:[#allocation2 + $0x30] sm:$0xff]
  %v119 = vld [vmem:[#allocation2 + $0x38] sm:$0xff]
  %vm120 = vcmask 261120
  %121 = vst.msk [vmem:[%s2] sm:$0xff] %vm120, %v112
  %122 = vst.msk [vmem:[%s2 + $0x8] sm:$0xff] %vm120, %v113
  %123 = vst.msk [vmem:[%s2 + $0x10] sm:$0xff] %vm120, %v114
  %124 = vst.msk [vmem:[%s2 + $0x18] sm:$0xff] %vm120, %v115
  %125 = vst.msk [vmem:[%s2 + $0x20] sm:$0xff] %vm120, %v116
  %126 = vst.msk [vmem:[%s2 + $0x28] sm:$0xff] %vm120, %v117
  %127 = vst.msk [vmem:[%s2 + $0x30] sm:$0xff] %vm120, %v118
  %128 = vst.msk [vmem:[%s2 + $0x38] sm:$0xff] %vm120, %v119
  // Predicated region
  $region80: #{tpu_custom_call.1} parent=0 // pred_check
    _
  $region81: #{tpu_custom_call.1} parent=0 // pred_check_branch
    %130 = sbr.rel (0) target = $region83
  $region82: #{tpu_custom_call.1} parent=0 // pred_region
    _
  $region83: #{tpu_custom_call.1} parent=0 // pred_fallthru
    _
  // Predicated region
  $region84: #{tpu_custom_call.1} parent=0 // pred_check
    _
  $region85: #{tpu_custom_call.1} parent=0 // pred_check_branch
    %132 = sbr.rel (0) target = $region87
  $region86: #{tpu_custom_call.1} parent=0 // pred_region
    _
  $region87: #{tpu_custom_call.1} parent=0 // pred_fallthru
    _
  %133 = vsyncmov [#allocation3]
  %s134 = vpop.sfrf %133
  %p135 = scmp.eq.s32.totalorder %s134, 0
  %p136 = pneg %p135
  %138 = shalt.err (%p136)

</llo_original>
